<compile_context>
chip_gen: v7x
topology: tpu7x:2x2x1
jax: 0.10.0
libtpu: 0.0.40
codegen_flags: <defaults>
</compile_context>

<pallas_src>
import functools

import jax
import jax.numpy as jnp
from jax import lax
from jax.experimental import pallas as pl
from jax.experimental.pallas import tpu as pltpu


def _dsconv_kernel(x_ref, wf_ref, o_ref, xpad_ref, col_ref, *,
                   kernel_size, dilation, stride, h_in, w_in, pad_beg,
                   wp_pad, h_out, w_out, p_val):
    """Fused depthwise-separable conv for one batch element.

    x_ref   : (1, Cin, H*W)       flat NCHW input block
    wf_ref  : (Cout, K*K*Cin)     fused depthwise*pointwise weights
    o_ref   : (1, Cout, Ho*Wo)    lane-dense NCHW-flat output block
    xpad_ref: (Cin, Hp*Wp)        VMEM scratch: zero-padded flat image
    col_ref : (K*K*Cin, Pval)     VMEM scratch: im2col matrix
    """
    cin = x_ref.shape[1]
    cout = o_ref.shape[1]

    # ---- fixed_padding, done in VMEM (zero halo + row-wise interior copy) ----
    xpad_ref[...] = jnp.zeros_like(xpad_ref)
    for hh in range(h_in):
        dst = (hh + pad_beg) * wp_pad + pad_beg
        xpad_ref[:, dst:dst + w_in] = x_ref[0, :, hh * w_in:(hh + 1) * w_in]

    # ---- im2col: tap (kh, kw) is a contiguous lane-offset window of the flat
    #      padded image.  max(s) + p_val == Hp*Wp, so every window is in-bounds.
    for kh in range(kernel_size):
        for kw in range(kernel_size):
            t = kh * kernel_size + kw
            s = (kh * wp_pad + kw) * dilation
            col_ref[t * cin:(t + 1) * cin, :] = xpad_ref[:, s:s + p_val]

    # ---- depthwise + pointwise fused into one MXU matmul (f32 accumulate) ----
    acc = jnp.dot(wf_ref[...], col_ref[...],
                  preferred_element_type=jnp.float32)       # (Cout, Pval)

    # ---- pick the valid / stride-decimated columns -> (Cout, Ho*Wo) ----
    for hh in range(h_out):
        row0 = hh * stride * wp_pad
        if stride == 1:
            piece = acc[:, row0:row0 + w_out]
        else:
            piece = lax.slice(acc, (0, row0),
                              (cout, row0 + (w_out - 1) * stride + 1),
                              (1, stride))
        o_ref[0, :, hh * w_out:(hh + 1) * w_out] = piece.astype(o_ref.dtype)


def depthwise_separable_conv(x_nchw, w_dw, w_pw, *, kernel_size, dilation=1,
                             stride=1):
    """x_nchw: (N, Cin, H, W); w_dw: (Cin, 1, K, K); w_pw: (Cout, Cin, 1, 1)."""
    n, cin, h, w = x_nchw.shape
    cout = w_pw.shape[0]

    # fixed_padding geometry (identical to the PyTorch helper)
    k_eff = kernel_size + (kernel_size - 1) * (dilation - 1)
    pad_total = k_eff - 1
    pad_beg = pad_total // 2
    hp, wp = h + pad_total, w + pad_total
    h_out = (hp - k_eff) // stride + 1
    w_out = (wp - k_eff) // stride + 1

    # Fold depthwise taps into the pointwise weight:
    #   Wf[co, kh, kw, ci] = wpw[co, ci] * wdw[ci, kh, kw]
    wdw = w_dw[:, 0, :, :]                      # (Cin, K, K)
    wpw = w_pw[:, :, 0, 0]                      # (Cout, Cin)
    wf = jnp.einsum('oc,ckl->oklc', wpw, wdw).reshape(
        cout, kernel_size * kernel_size * cin)

    # Free reshape only: stays NCHW-contiguous, no transpose / no HBM pad copy.
    x_flat = x_nchw.reshape(n, cin, h * w)

    p_pad = hp * wp
    p_val = (h_out - 1) * stride * wp + (w_out - 1) * stride + 1

    kernel = functools.partial(
        _dsconv_kernel, kernel_size=kernel_size, dilation=dilation,
        stride=stride, h_in=h, w_in=w, pad_beg=pad_beg, wp_pad=wp,
        h_out=h_out, w_out=w_out, p_val=p_val)

    # Note: on v6e/v7x the activations/weights could be DMA'd as bf16 (f32
    # accumulate) to halve HBM bytes; kept f32 here to match module numerics.
    out_flat = pl.pallas_call(
        kernel,
        out_shape=jax.ShapeDtypeStruct((n, cout, h_out * w_out), x_nchw.dtype),
        grid_spec=pltpu.PrefetchScalarGridSpec(
            num_scalar_prefetch=0,
            grid=(n,),
            in_specs=[
                pl.BlockSpec((1, cin, h * w), lambda i: (i, 0, 0)),
                pl.BlockSpec((cout, kernel_size * kernel_size * cin),
                             lambda i: (0, 0)),
            ],
            out_specs=pl.BlockSpec((1, cout, h_out * w_out),
                                   lambda i: (i, 0, 0)),
            scratch_shapes=[
                pltpu.VMEM((cin, p_pad), x_nchw.dtype),
                pltpu.VMEM((kernel_size * kernel_size * cin, p_val),
                           x_nchw.dtype),
            ],
        ),
        compiler_params=pltpu.CompilerParams(
            dimension_semantics=("parallel",),
            vmem_limit_bytes=32 * 1024 * 1024),
    )(x_flat, wf)

    # Output is already NCHW-flat; splitting Ho*Wo -> (Ho, Wo) is a free reshape.
    return out_flat.reshape(n, cout, h_out, w_out)


def _reference(x_nchw, w_dw, w_pw, *, kernel_size, dilation=1, stride=1):
    """Plain-JAX reference mirroring the PyTorch forward, for verification."""
    k_eff = kernel_size + (kernel_size - 1) * (dilation - 1)
    pad_total = k_eff - 1
    pad_beg = pad_total // 2
    pad_end = pad_total - pad_beg
    xp = jnp.pad(x_nchw, ((0, 0), (0, 0), (pad_beg, pad_end),
                          (pad_beg, pad_end)))
    dw = lax.conv_general_dilated(
        xp, w_dw, (stride, stride), "VALID",
        rhs_dilation=(dilation, dilation),
        dimension_numbers=("NCHW", "OIHW", "NCHW"),
        feature_group_count=x_nchw.shape[1])
    pw = lax.conv_general_dilated(
        dw, w_pw, (1, 1), "VALID",
        dimension_numbers=("NCHW", "OIHW", "NCHW"))
    return pw


if __name__ == "__main__":
    # Module config: DepthwiseSeparableConv(nin=4, nout=8, kernel_size=3,
    #                                       padding=1, bias=False)
    nin, nout, kernel_size, dilation, stride = 4, 8, 3, 1, 1
    batch, height, width = 2, 16, 16

    key = jax.random.PRNGKey(0)
    kx, kdw, kpw = jax.random.split(key, 3)
    x = jax.random.normal(kx, (batch, nin, height, width), jnp.float32)
    # nn.Conv2d weight shapes: depthwise (nin, 1, K, K), pointwise (nout, nin, 1, 1)
    w_dw = jax.random.normal(kdw, (nin, 1, kernel_size, kernel_size),
                             jnp.float32) * 0.1
    w_pw = jax.random.normal(kpw, (nout, nin, 1, 1), jnp.float32) * 0.1

    out = depthwise_separable_conv(x, w_dw, w_pw, kernel_size=kernel_size,
                                   dilation=dilation, stride=stride)
    out = jax.block_until_ready(out)

    ref = _reference(x, w_dw, w_pw, kernel_size=kernel_size,
                     dilation=dilation, stride=stride)
    assert out.shape == ref.shape, (out.shape, ref.shape)
    assert jnp.allclose(out, ref, atol=1e-4, rtol=1e-4), (
        float(jnp.max(jnp.abs(out - ref))))

    print("KERNEL_OK")
</pallas_src>

<mosaic_0001>
module attributes {stable_mosaic.version = 11 : i64} {
  func.func @_dsconv_kernel(%arg0: i32, %arg1: memref<1x4x256xf32, #tpu.memory_space<vmem>>, %arg2: memref<8x36xf32, #tpu.memory_space<vmem>>, %arg3: memref<1x8x256xf32, #tpu.memory_space<vmem>>, %arg4: memref<4x324xf32, #tpu.memory_space<vmem>>, %arg5: memref<36x286xf32, #tpu.memory_space<vmem>>) attributes {dimension_semantics = [#tpu.dimension_semantics<parallel>], iteration_bounds = array<i64: 2>, scalar_prefetch = 0 : i64, scratch_operands = 2 : i64, tpu.core_type = #tpu.core_type<tc>, window_params = [{transform_indices = @transform_0, window_bounds = array<i64: 1, 4, 256>}, {pipeline_mode = #tpu.pipeline_mode<synchronous>, transform_indices = @transform_1, window_bounds = array<i64: 8, 36>}, {transform_indices = @transform_2, window_bounds = array<i64: 1, 8, 256>}]} {
    %cst = arith.constant 0.000000e+00 : f32
    %0 = vector.broadcast %cst : f32 to vector<4x324xf32>
    %c0 = arith.constant 0 : index
    %c0_0 = arith.constant 0 : index
    %1 = vector.load %arg4[%c0, %c0_0] : memref<4x324xf32, #tpu.memory_space<vmem>>, vector<4x324xf32>
    tpu.vector_store %arg4[%c0, %c0_0], %0 {strides = array<i32>} : memref<4x324xf32, #tpu.memory_space<vmem>>, vector<4x324xf32>,
    %c0_1 = arith.constant 0 : index
    %c0_2 = arith.constant 0 : index
    %c0_3 = arith.constant 0 : index
    %2 = vector.load %arg1[%c0_1, %c0_2, %c0_3] : memref<1x4x256xf32, #tpu.memory_space<vmem>>, vector<1x4x16xf32>
    %3 = vector.shape_cast %2 : vector<1x4x16xf32> to vector<4x16xf32>
    %c0_4 = arith.constant 0 : index
    %c19 = arith.constant 19 : index
    %4 = vector.load %arg4[%c0_4, %c19] : memref<4x324xf32, #tpu.memory_space<vmem>>, vector<4x16xf32>
    tpu.vector_store %arg4[%c0_4, %c19], %3 {strides = array<i32>} : memref<4x324xf32, #tpu.memory_space<vmem>>, vector<4x16xf32>,
    %c0_5 = arith.constant 0 : index
    %c0_6 = arith.constant 0 : index
    %c16 = arith.constant 16 : index
    %5 = vector.load %arg1[%c0_5, %c0_6, %c16] : memref<1x4x256xf32, #tpu.memory_space<vmem>>, vector<1x4x16xf32>
    %6 = vector.shape_cast %5 : vector<1x4x16xf32> to vector<4x16xf32>
    %c0_7 = arith.constant 0 : index
    %c37 = arith.constant 37 : index
    %7 = vector.load %arg4[%c0_7, %c37] : memref<4x324xf32, #tpu.memory_space<vmem>>, vector<4x16xf32>
    tpu.vector_store %arg4[%c0_7, %c37], %6 {strides = array<i32>} : memref<4x324xf32, #tpu.memory_space<vmem>>, vector<4x16xf32>,
    %c0_8 = arith.constant 0 : index
    %c0_9 = arith.constant 0 : index
    %c32 = arith.constant 32 : index
    %8 = vector.load %arg1[%c0_8, %c0_9, %c32] : memref<1x4x256xf32, #tpu.memory_space<vmem>>, vector<1x4x16xf32>
    %9 = vector.shape_cast %8 : vector<1x4x16xf32> to vector<4x16xf32>
    %c0_10 = arith.constant 0 : index
    %c55 = arith.constant 55 : index
    %10 = vector.load %arg4[%c0_10, %c55] : memref<4x324xf32, #tpu.memory_space<vmem>>, vector<4x16xf32>
    tpu.vector_store %arg4[%c0_10, %c55], %9 {strides = array<i32>} : memref<4x324xf32, #tpu.memory_space<vmem>>, vector<4x16xf32>,
    %c0_11 = arith.constant 0 : index
    %c0_12 = arith.constant 0 : index
    %c48 = arith.constant 48 : index
    %11 = vector.load %arg1[%c0_11, %c0_12, %c48] : memref<1x4x256xf32, #tpu.memory_space<vmem>>, vector<1x4x16xf32>
    %12 = vector.shape_cast %11 : vector<1x4x16xf32> to vector<4x16xf32>
    %c0_13 = arith.constant 0 : index
    %c73 = arith.constant 73 : index
    %13 = vector.load %arg4[%c0_13, %c73] : memref<4x324xf32, #tpu.memory_space<vmem>>, vector<4x16xf32>
    tpu.vector_store %arg4[%c0_13, %c73], %12 {strides = array<i32>} : memref<4x324xf32, #tpu.memory_space<vmem>>, vector<4x16xf32>,
    %c0_14 = arith.constant 0 : index
    %c0_15 = arith.constant 0 : index
    %c64 = arith.constant 64 : index
    %14 = vector.load %arg1[%c0_14, %c0_15, %c64] : memref<1x4x256xf32, #tpu.memory_space<vmem>>, vector<1x4x16xf32>
    %15 = vector.shape_cast %14 : vector<1x4x16xf32> to vector<4x16xf32>
    %c0_16 = arith.constant 0 : index
    %c91 = arith.constant 91 : index
    %16 = vector.load %arg4[%c0_16, %c91] : memref<4x324xf32, #tpu.memory_space<vmem>>, vector<4x16xf32>
    tpu.vector_store %arg4[%c0_16, %c91], %15 {strides = array<i32>} : memref<4x324xf32, #tpu.memory_space<vmem>>, vector<4x16xf32>,
    %c0_17 = arith.constant 0 : index
    %c0_18 = arith.constant 0 : index
    %c80 = arith.constant 80 : index
    %17 = vector.load %arg1[%c0_17, %c0_18, %c80] : memref<1x4x256xf32, #tpu.memory_space<vmem>>, vector<1x4x16xf32>
    %18 = vector.shape_cast %17 : vector<1x4x16xf32> to vector<4x16xf32>
    %c0_19 = arith.constant 0 : index
    %c109 = arith.constant 109 : index
    %19 = vector.load %arg4[%c0_19, %c109] : memref<4x324xf32, #tpu.memory_space<vmem>>, vector<4x16xf32>
    tpu.vector_store %arg4[%c0_19, %c109], %18 {strides = array<i32>} : memref<4x324xf32, #tpu.memory_space<vmem>>, vector<4x16xf32>,
    %c0_20 = arith.constant 0 : index
    %c0_21 = arith.constant 0 : index
    %c96 = arith.constant 96 : index
    %20 = vector.load %arg1[%c0_20, %c0_21, %c96] : memref<1x4x256xf32, #tpu.memory_space<vmem>>, vector<1x4x16xf32>
    %21 = vector.shape_cast %20 : vector<1x4x16xf32> to vector<4x16xf32>
    %c0_22 = arith.constant 0 : index
    %c127 = arith.constant 127 : index
    %22 = vector.load %arg4[%c0_22, %c127] : memref<4x324xf32, #tpu.memory_space<vmem>>, vector<4x16xf32>
    tpu.vector_store %arg4[%c0_22, %c127], %21 {strides = array<i32>} : memref<4x324xf32, #tpu.memory_space<vmem>>, vector<4x16xf32>,
    %c0_23 = arith.constant 0 : index
    %c0_24 = arith.constant 0 : index
    %c112 = arith.constant 112 : index
    %23 = vector.load %arg1[%c0_23, %c0_24, %c112] : memref<1x4x256xf32, #tpu.memory_space<vmem>>, vector<1x4x16xf32>
    %24 = vector.shape_cast %23 : vector<1x4x16xf32> to vector<4x16xf32>
    %c0_25 = arith.constant 0 : index
    %c145 = arith.constant 145 : index
    %25 = vector.load %arg4[%c0_25, %c145] : memref<4x324xf32, #tpu.memory_space<vmem>>, vector<4x16xf32>
    tpu.vector_store %arg4[%c0_25, %c145], %24 {strides = array<i32>} : memref<4x324xf32, #tpu.memory_space<vmem>>, vector<4x16xf32>,
    %c0_26 = arith.constant 0 : index
    %c0_27 = arith.constant 0 : index
    %c128 = arith.constant 128 : index
    %26 = vector.load %arg1[%c0_26, %c0_27, %c128] : memref<1x4x256xf32, #tpu.memory_space<vmem>>, vector<1x4x16xf32>
    %27 = vector.shape_cast %26 : vector<1x4x16xf32> to vector<4x16xf32>
    %c0_28 = arith.constant 0 : index
    %c163 = arith.constant 163 : index
    %28 = vector.load %arg4[%c0_28, %c163] : memref<4x324xf32, #tpu.memory_space<vmem>>, vector<4x16xf32>
    tpu.vector_store %arg4[%c0_28, %c163], %27 {strides = array<i32>} : memref<4x324xf32, #tpu.memory_space<vmem>>, vector<4x16xf32>,
    %c0_29 = arith.constant 0 : index
    %c0_30 = arith.constant 0 : index
    %c144 = arith.constant 144 : index
    %29 = vector.load %arg1[%c0_29, %c0_30, %c144] : memref<1x4x256xf32, #tpu.memory_space<vmem>>, vector<1x4x16xf32>
    %30 = vector.shape_cast %29 : vector<1x4x16xf32> to vector<4x16xf32>
    %c0_31 = arith.constant 0 : index
    %c181 = arith.constant 181 : index
    %31 = vector.load %arg4[%c0_31, %c181] : memref<4x324xf32, #tpu.memory_space<vmem>>, vector<4x16xf32>
    tpu.vector_store %arg4[%c0_31, %c181], %30 {strides = array<i32>} : memref<4x324xf32, #tpu.memory_space<vmem>>, vector<4x16xf32>,
    %c0_32 = arith.constant 0 : index
    %c0_33 = arith.constant 0 : index
    %c160 = arith.constant 160 : index
    %32 = vector.load %arg1[%c0_32, %c0_33, %c160] : memref<1x4x256xf32, #tpu.memory_space<vmem>>, vector<1x4x16xf32>
    %33 = vector.shape_cast %32 : vector<1x4x16xf32> to vector<4x16xf32>
    %c0_34 = arith.constant 0 : index
    %c199 = arith.constant 199 : index
    %34 = vector.load %arg4[%c0_34, %c199] : memref<4x324xf32, #tpu.memory_space<vmem>>, vector<4x16xf32>
    tpu.vector_store %arg4[%c0_34, %c199], %33 {strides = array<i32>} : memref<4x324xf32, #tpu.memory_space<vmem>>, vector<4x16xf32>,
    %c0_35 = arith.constant 0 : index
    %c0_36 = arith.constant 0 : index
    %c176 = arith.constant 176 : index
    %35 = vector.load %arg1[%c0_35, %c0_36, %c176] : memref<1x4x256xf32, #tpu.memory_space<vmem>>, vector<1x4x16xf32>
    %36 = vector.shape_cast %35 : vector<1x4x16xf32> to vector<4x16xf32>
    %c0_37 = arith.constant 0 : index
    %c217 = arith.constant 217 : index
    %37 = vector.load %arg4[%c0_37, %c217] : memref<4x324xf32, #tpu.memory_space<vmem>>, vector<4x16xf32>
    tpu.vector_store %arg4[%c0_37, %c217], %36 {strides = array<i32>} : memref<4x324xf32, #tpu.memory_space<vmem>>, vector<4x16xf32>,
    %c0_38 = arith.constant 0 : index
    %c0_39 = arith.constant 0 : index
    %c192 = arith.constant 192 : index
    %38 = vector.load %arg1[%c0_38, %c0_39, %c192] : memref<1x4x256xf32, #tpu.memory_space<vmem>>, vector<1x4x16xf32>
    %39 = vector.shape_cast %38 : vector<1x4x16xf32> to vector<4x16xf32>
    %c0_40 = arith.constant 0 : index
    %c235 = arith.constant 235 : index
    %40 = vector.load %arg4[%c0_40, %c235] : memref<4x324xf32, #tpu.memory_space<vmem>>, vector<4x16xf32>
    tpu.vector_store %arg4[%c0_40, %c235], %39 {strides = array<i32>} : memref<4x324xf32, #tpu.memory_space<vmem>>, vector<4x16xf32>,
    %c0_41 = arith.constant 0 : index
    %c0_42 = arith.constant 0 : index
    %c208 = arith.constant 208 : index
    %41 = vector.load %arg1[%c0_41, %c0_42, %c208] : memref<1x4x256xf32, #tpu.memory_space<vmem>>, vector<1x4x16xf32>
    %42 = vector.shape_cast %41 : vector<1x4x16xf32> to vector<4x16xf32>
    %c0_43 = arith.constant 0 : index
    %c253 = arith.constant 253 : index
    %43 = vector.load %arg4[%c0_43, %c253] : memref<4x324xf32, #tpu.memory_space<vmem>>, vector<4x16xf32>
    tpu.vector_store %arg4[%c0_43, %c253], %42 {strides = array<i32>} : memref<4x324xf32, #tpu.memory_space<vmem>>, vector<4x16xf32>,
    %c0_44 = arith.constant 0 : index
    %c0_45 = arith.constant 0 : index
    %c224 = arith.constant 224 : index
    %44 = vector.load %arg1[%c0_44, %c0_45, %c224] : memref<1x4x256xf32, #tpu.memory_space<vmem>>, vector<1x4x16xf32>
    %45 = vector.shape_cast %44 : vector<1x4x16xf32> to vector<4x16xf32>
    %c0_46 = arith.constant 0 : index
    %c271 = arith.constant 271 : index
    %46 = vector.load %arg4[%c0_46, %c271] : memref<4x324xf32, #tpu.memory_space<vmem>>, vector<4x16xf32>
    tpu.vector_store %arg4[%c0_46, %c271], %45 {strides = array<i32>} : memref<4x324xf32, #tpu.memory_space<vmem>>, vector<4x16xf32>,
    %c0_47 = arith.constant 0 : index
    %c0_48 = arith.constant 0 : index
    %c240 = arith.constant 240 : index
    %47 = vector.load %arg1[%c0_47, %c0_48, %c240] : memref<1x4x256xf32, #tpu.memory_space<vmem>>, vector<1x4x16xf32>
    %48 = vector.shape_cast %47 : vector<1x4x16xf32> to vector<4x16xf32>
    %c0_49 = arith.constant 0 : index
    %c289 = arith.constant 289 : index
    %49 = vector.load %arg4[%c0_49, %c289] : memref<4x324xf32, #tpu.memory_space<vmem>>, vector<4x16xf32>
    tpu.vector_store %arg4[%c0_49, %c289], %48 {strides = array<i32>} : memref<4x324xf32, #tpu.memory_space<vmem>>, vector<4x16xf32>,
    %c0_50 = arith.constant 0 : index
    %c0_51 = arith.constant 0 : index
    %50 = vector.load %arg4[%c0_50, %c0_51] : memref<4x324xf32, #tpu.memory_space<vmem>>, vector<4x286xf32>
    %c0_52 = arith.constant 0 : index
    %c0_53 = arith.constant 0 : index
    %51 = vector.load %arg5[%c0_52, %c0_53] : memref<36x286xf32, #tpu.memory_space<vmem>>, vector<4x286xf32>
    tpu.vector_store %arg5[%c0_52, %c0_53], %50 {strides = array<i32>} : memref<36x286xf32, #tpu.memory_space<vmem>>, vector<4x286xf32>,
    %c0_54 = arith.constant 0 : index
    %c1 = arith.constant 1 : index
    %52 = vector.load %arg4[%c0_54, %c1] : memref<4x324xf32, #tpu.memory_space<vmem>>, vector<4x286xf32>
    %c4 = arith.constant 4 : index
    %c0_55 = arith.constant 0 : index
    %53 = vector.load %arg5[%c4, %c0_55] : memref<36x286xf32, #tpu.memory_space<vmem>>, vector<4x286xf32>
    tpu.vector_store %arg5[%c4, %c0_55], %52 {strides = array<i32>} : memref<36x286xf32, #tpu.memory_space<vmem>>, vector<4x286xf32>,
    %c0_56 = arith.constant 0 : index
    %c2 = arith.constant 2 : index
    %54 = vector.load %arg4[%c0_56, %c2] : memref<4x324xf32, #tpu.memory_space<vmem>>, vector<4x286xf32>
    %c8 = arith.constant 8 : index
    %c0_57 = arith.constant 0 : index
    %55 = vector.load %arg5[%c8, %c0_57] : memref<36x286xf32, #tpu.memory_space<vmem>>, vector<4x286xf32>
    tpu.vector_store %arg5[%c8, %c0_57], %54 {strides = array<i32>} : memref<36x286xf32, #tpu.memory_space<vmem>>, vector<4x286xf32>,
    %c0_58 = arith.constant 0 : index
    %c18 = arith.constant 18 : index
    %56 = vector.load %arg4[%c0_58, %c18] : memref<4x324xf32, #tpu.memory_space<vmem>>, vector<4x286xf32>
    %c12 = arith.constant 12 : index
    %c0_59 = arith.constant 0 : index
    %57 = vector.load %arg5[%c12, %c0_59] : memref<36x286xf32, #tpu.memory_space<vmem>>, vector<4x286xf32>
    tpu.vector_store %arg5[%c12, %c0_59], %56 {strides = array<i32>} : memref<36x286xf32, #tpu.memory_space<vmem>>, vector<4x286xf32>,
    %c0_60 = arith.constant 0 : index
    %c19_61 = arith.constant 19 : index
    %58 = vector.load %arg4[%c0_60, %c19_61] : memref<4x324xf32, #tpu.memory_space<vmem>>, vector<4x286xf32>
    %c16_62 = arith.constant 16 : index
    %c0_63 = arith.constant 0 : index
    %59 = vector.load %arg5[%c16_62, %c0_63] : memref<36x286xf32, #tpu.memory_space<vmem>>, vector<4x286xf32>
    tpu.vector_store %arg5[%c16_62, %c0_63], %58 {strides = array<i32>} : memref<36x286xf32, #tpu.memory_space<vmem>>, vector<4x286xf32>,
    %c0_64 = arith.constant 0 : index
    %c20 = arith.constant 20 : index
    %60 = vector.load %arg4[%c0_64, %c20] : memref<4x324xf32, #tpu.memory_space<vmem>>, vector<4x286xf32>
    %c20_65 = arith.constant 20 : index
    %c0_66 = arith.constant 0 : index
    %61 = vector.load %arg5[%c20_65, %c0_66] : memref<36x286xf32, #tpu.memory_space<vmem>>, vector<4x286xf32>
    tpu.vector_store %arg5[%c20_65, %c0_66], %60 {strides = array<i32>} : memref<36x286xf32, #tpu.memory_space<vmem>>, vector<4x286xf32>,
    %c0_67 = arith.constant 0 : index
    %c36 = arith.constant 36 : index
    %62 = vector.load %arg4[%c0_67, %c36] : memref<4x324xf32, #tpu.memory_space<vmem>>, vector<4x286xf32>
    %c24 = arith.constant 24 : index
    %c0_68 = arith.constant 0 : index
    %63 = vector.load %arg5[%c24, %c0_68] : memref<36x286xf32, #tpu.memory_space<vmem>>, vector<4x286xf32>
    tpu.vector_store %arg5[%c24, %c0_68], %62 {strides = array<i32>} : memref<36x286xf32, #tpu.memory_space<vmem>>, vector<4x286xf32>,
    %c0_69 = arith.constant 0 : index
    %c37_70 = arith.constant 37 : index
    %64 = vector.load %arg4[%c0_69, %c37_70] : memref<4x324xf32, #tpu.memory_space<vmem>>, vector<4x286xf32>
    %c28 = arith.constant 28 : index
    %c0_71 = arith.constant 0 : index
    %65 = vector.load %arg5[%c28, %c0_71] : memref<36x286xf32, #tpu.memory_space<vmem>>, vector<4x286xf32>
    tpu.vector_store %arg5[%c28, %c0_71], %64 {strides = array<i32>} : memref<36x286xf32, #tpu.memory_space<vmem>>, vector<4x286xf32>,
    %c0_72 = arith.constant 0 : index
    %c38 = arith.constant 38 : index
    %66 = vector.load %arg4[%c0_72, %c38] : memref<4x324xf32, #tpu.memory_space<vmem>>, vector<4x286xf32>
    %c32_73 = arith.constant 32 : index
    %c0_74 = arith.constant 0 : index
    %67 = vector.load %arg5[%c32_73, %c0_74] : memref<36x286xf32, #tpu.memory_space<vmem>>, vector<4x286xf32>
    tpu.vector_store %arg5[%c32_73, %c0_74], %66 {strides = array<i32>} : memref<36x286xf32, #tpu.memory_space<vmem>>, vector<4x286xf32>,
    %c0_75 = arith.constant 0 : index
    %c0_76 = arith.constant 0 : index
    %68 = vector.load %arg2[%c0_75, %c0_76] : memref<8x36xf32, #tpu.memory_space<vmem>>, vector<8x36xf32>
    %c0_77 = arith.constant 0 : index
    %c0_78 = arith.constant 0 : index
    %69 = vector.load %arg5[%c0_77, %c0_78] : memref<36x286xf32, #tpu.memory_space<vmem>>, vector<36x286xf32>
    %cst_79 = arith.constant dense<0.000000e+00> : vector<8x286xf32>
    %70 = tpu.matmul %68, %69, %cst_79 {dimension_numbers = #tpu.dot_dimension_numbers<[1], [0], [0], [1], [0, 0, 1, 1], [], []>} : vector<8x36xf32>, vector<36x286xf32>, vector<8x286xf32> -> vector<8x286xf32>
    %71 = vector.extract_strided_slice %70 {offsets = [0, 0], sizes = [8, 16], strides = [1, 1]} : vector<8x286xf32> to vector<8x16xf32>
    %c0_80 = arith.constant 0 : index
    %c0_81 = arith.constant 0 : index
    %c0_82 = arith.constant 0 : index
    %72 = vector.load %arg3[%c0_80, %c0_81, %c0_82] : memref<1x8x256xf32, #tpu.memory_space<vmem>>, vector<1x8x16xf32>
    %73 = vector.shape_cast %72 : vector<1x8x16xf32> to vector<8x16xf32>
    %74 = vector.shape_cast %71 : vector<8x16xf32> to vector<1x8x16xf32>
    tpu.vector_store %arg3[%c0_80, %c0_81, %c0_82], %74 {strides = array<i32>} : memref<1x8x256xf32, #tpu.memory_space<vmem>>, vector<1x8x16xf32>,
    %75 = vector.extract_strided_slice %70 {offsets = [0, 18], sizes = [8, 16], strides = [1, 1]} : vector<8x286xf32> to vector<8x16xf32>
    %c0_83 = arith.constant 0 : index
    %c0_84 = arith.constant 0 : index
    %c16_85 = arith.constant 16 : index
    %76 = vector.load %arg3[%c0_83, %c0_84, %c16_85] : memref<1x8x256xf32, #tpu.memory_space<vmem>>, vector<1x8x16xf32>
    %77 = vector.shape_cast %76 : vector<1x8x16xf32> to vector<8x16xf32>
    %78 = vector.shape_cast %75 : vector<8x16xf32> to vector<1x8x16xf32>
    tpu.vector_store %arg3[%c0_83, %c0_84, %c16_85], %78 {strides = array<i32>} : memref<1x8x256xf32, #tpu.memory_space<vmem>>, vector<1x8x16xf32>,
    %79 = vector.extract_strided_slice %70 {offsets = [0, 36], sizes = [8, 16], strides = [1, 1]} : vector<8x286xf32> to vector<8x16xf32>
    %c0_86 = arith.constant 0 : index
    %c0_87 = arith.constant 0 : index
    %c32_88 = arith.constant 32 : index
    %80 = vector.load %arg3[%c0_86, %c0_87, %c32_88] : memref<1x8x256xf32, #tpu.memory_space<vmem>>, vector<1x8x16xf32>
    %81 = vector.shape_cast %80 : vector<1x8x16xf32> to vector<8x16xf32>
    %82 = vector.shape_cast %79 : vector<8x16xf32> to vector<1x8x16xf32>
    tpu.vector_store %arg3[%c0_86, %c0_87, %c32_88], %82 {strides = array<i32>} : memref<1x8x256xf32, #tpu.memory_space<vmem>>, vector<1x8x16xf32>,
    %83 = vector.extract_strided_slice %70 {offsets = [0, 54], sizes = [8, 16], strides = [1, 1]} : vector<8x286xf32> to vector<8x16xf32>
    %c0_89 = arith.constant 0 : index
    %c0_90 = arith.constant 0 : index
    %c48_91 = arith.constant 48 : index
    %84 = vector.load %arg3[%c0_89, %c0_90, %c48_91] : memref<1x8x256xf32, #tpu.memory_space<vmem>>, vector<1x8x16xf32>
    %85 = vector.shape_cast %84 : vector<1x8x16xf32> to vector<8x16xf32>
    %86 = vector.shape_cast %83 : vector<8x16xf32> to vector<1x8x16xf32>
    tpu.vector_store %arg3[%c0_89, %c0_90, %c48_91], %86 {strides = array<i32>} : memref<1x8x256xf32, #tpu.memory_space<vmem>>, vector<1x8x16xf32>,
    %87 = vector.extract_strided_slice %70 {offsets = [0, 72], sizes = [8, 16], strides = [1, 1]} : vector<8x286xf32> to vector<8x16xf32>
    %c0_92 = arith.constant 0 : index
    %c0_93 = arith.constant 0 : index
    %c64_94 = arith.constant 64 : index
    %88 = vector.load %arg3[%c0_92, %c0_93, %c64_94] : memref<1x8x256xf32, #tpu.memory_space<vmem>>, vector<1x8x16xf32>
    %89 = vector.shape_cast %88 : vector<1x8x16xf32> to vector<8x16xf32>
    %90 = vector.shape_cast %87 : vector<8x16xf32> to vector<1x8x16xf32>
    tpu.vector_store %arg3[%c0_92, %c0_93, %c64_94], %90 {strides = array<i32>} : memref<1x8x256xf32, #tpu.memory_space<vmem>>, vector<1x8x16xf32>,
    %91 = vector.extract_strided_slice %70 {offsets = [0, 90], sizes = [8, 16], strides = [1, 1]} : vector<8x286xf32> to vector<8x16xf32>
    %c0_95 = arith.constant 0 : index
    %c0_96 = arith.constant 0 : index
    %c80_97 = arith.constant 80 : index
    %92 = vector.load %arg3[%c0_95, %c0_96, %c80_97] : memref<1x8x256xf32, #tpu.memory_space<vmem>>, vector<1x8x16xf32>
    %93 = vector.shape_cast %92 : vector<1x8x16xf32> to vector<8x16xf32>
    %94 = vector.shape_cast %91 : vector<8x16xf32> to vector<1x8x16xf32>
    tpu.vector_store %arg3[%c0_95, %c0_96, %c80_97], %94 {strides = array<i32>} : memref<1x8x256xf32, #tpu.memory_space<vmem>>, vector<1x8x16xf32>,
    %95 = vector.extract_strided_slice %70 {offsets = [0, 108], sizes = [8, 16], strides = [1, 1]} : vector<8x286xf32> to vector<8x16xf32>
    %c0_98 = arith.constant 0 : index
    %c0_99 = arith.constant 0 : index
    %c96_100 = arith.constant 96 : index
    %96 = vector.load %arg3[%c0_98, %c0_99, %c96_100] : memref<1x8x256xf32, #tpu.memory_space<vmem>>, vector<1x8x16xf32>
    %97 = vector.shape_cast %96 : vector<1x8x16xf32> to vector<8x16xf32>
    %98 = vector.shape_cast %95 : vector<8x16xf32> to vector<1x8x16xf32>
    tpu.vector_store %arg3[%c0_98, %c0_99, %c96_100], %98 {strides = array<i32>} : memref<1x8x256xf32, #tpu.memory_space<vmem>>, vector<1x8x16xf32>,
    %99 = vector.extract_strided_slice %70 {offsets = [0, 126], sizes = [8, 16], strides = [1, 1]} : vector<8x286xf32> to vector<8x16xf32>
    %c0_101 = arith.constant 0 : index
    %c0_102 = arith.constant 0 : index
    %c112_103 = arith.constant 112 : index
    %100 = vector.load %arg3[%c0_101, %c0_102, %c112_103] : memref<1x8x256xf32, #tpu.memory_space<vmem>>, vector<1x8x16xf32>
    %101 = vector.shape_cast %100 : vector<1x8x16xf32> to vector<8x16xf32>
    %102 = vector.shape_cast %99 : vector<8x16xf32> to vector<1x8x16xf32>
    tpu.vector_store %arg3[%c0_101, %c0_102, %c112_103], %102 {strides = array<i32>} : memref<1x8x256xf32, #tpu.memory_space<vmem>>, vector<1x8x16xf32>,
    %103 = vector.extract_strided_slice %70 {offsets = [0, 144], sizes = [8, 16], strides = [1, 1]} : vector<8x286xf32> to vector<8x16xf32>
    %c0_104 = arith.constant 0 : index
    %c0_105 = arith.constant 0 : index
    %c128_106 = arith.constant 128 : index
    %104 = vector.load %arg3[%c0_104, %c0_105, %c128_106] : memref<1x8x256xf32, #tpu.memory_space<vmem>>, vector<1x8x16xf32>
    %105 = vector.shape_cast %104 : vector<1x8x16xf32> to vector<8x16xf32>
    %106 = vector.shape_cast %103 : vector<8x16xf32> to vector<1x8x16xf32>
    tpu.vector_store %arg3[%c0_104, %c0_105, %c128_106], %106 {strides = array<i32>} : memref<1x8x256xf32, #tpu.memory_space<vmem>>, vector<1x8x16xf32>,
    %107 = vector.extract_strided_slice %70 {offsets = [0, 162], sizes = [8, 16], strides = [1, 1]} : vector<8x286xf32> to vector<8x16xf32>
    %c0_107 = arith.constant 0 : index
    %c0_108 = arith.constant 0 : index
    %c144_109 = arith.constant 144 : index
    %108 = vector.load %arg3[%c0_107, %c0_108, %c144_109] : memref<1x8x256xf32, #tpu.memory_space<vmem>>, vector<1x8x16xf32>
    %109 = vector.shape_cast %108 : vector<1x8x16xf32> to vector<8x16xf32>
    %110 = vector.shape_cast %107 : vector<8x16xf32> to vector<1x8x16xf32>
    tpu.vector_store %arg3[%c0_107, %c0_108, %c144_109], %110 {strides = array<i32>} : memref<1x8x256xf32, #tpu.memory_space<vmem>>, vector<1x8x16xf32>,
    %111 = vector.extract_strided_slice %70 {offsets = [0, 180], sizes = [8, 16], strides = [1, 1]} : vector<8x286xf32> to vector<8x16xf32>
    %c0_110 = arith.constant 0 : index
    %c0_111 = arith.constant 0 : index
    %c160_112 = arith.constant 160 : index
    %112 = vector.load %arg3[%c0_110, %c0_111, %c160_112] : memref<1x8x256xf32, #tpu.memory_space<vmem>>, vector<1x8x16xf32>
    %113 = vector.shape_cast %112 : vector<1x8x16xf32> to vector<8x16xf32>
    %114 = vector.shape_cast %111 : vector<8x16xf32> to vector<1x8x16xf32>
    tpu.vector_store %arg3[%c0_110, %c0_111, %c160_112], %114 {strides = array<i32>} : memref<1x8x256xf32, #tpu.memory_space<vmem>>, vector<1x8x16xf32>,
    %115 = vector.extract_strided_slice %70 {offsets = [0, 198], sizes = [8, 16], strides = [1, 1]} : vector<8x286xf32> to vector<8x16xf32>
    %c0_113 = arith.constant 0 : index
    %c0_114 = arith.constant 0 : index
    %c176_115 = arith.constant 176 : index
    %116 = vector.load %arg3[%c0_113, %c0_114, %c176_115] : memref<1x8x256xf32, #tpu.memory_space<vmem>>, vector<1x8x16xf32>
    %117 = vector.shape_cast %116 : vector<1x8x16xf32> to vector<8x16xf32>
    %118 = vector.shape_cast %115 : vector<8x16xf32> to vector<1x8x16xf32>
    tpu.vector_store %arg3[%c0_113, %c0_114, %c176_115], %118 {strides = array<i32>} : memref<1x8x256xf32, #tpu.memory_space<vmem>>, vector<1x8x16xf32>,
    %119 = vector.extract_strided_slice %70 {offsets = [0, 216], sizes = [8, 16], strides = [1, 1]} : vector<8x286xf32> to vector<8x16xf32>
    %c0_116 = arith.constant 0 : index
    %c0_117 = arith.constant 0 : index
    %c192_118 = arith.constant 192 : index
    %120 = vector.load %arg3[%c0_116, %c0_117, %c192_118] : memref<1x8x256xf32, #tpu.memory_space<vmem>>, vector<1x8x16xf32>
    %121 = vector.shape_cast %120 : vector<1x8x16xf32> to vector<8x16xf32>
    %122 = vector.shape_cast %119 : vector<8x16xf32> to vector<1x8x16xf32>
    tpu.vector_store %arg3[%c0_116, %c0_117, %c192_118], %122 {strides = array<i32>} : memref<1x8x256xf32, #tpu.memory_space<vmem>>, vector<1x8x16xf32>,
    %123 = vector.extract_strided_slice %70 {offsets = [0, 234], sizes = [8, 16], strides = [1, 1]} : vector<8x286xf32> to vector<8x16xf32>
    %c0_119 = arith.constant 0 : index
    %c0_120 = arith.constant 0 : index
    %c208_121 = arith.constant 208 : index
    %124 = vector.load %arg3[%c0_119, %c0_120, %c208_121] : memref<1x8x256xf32, #tpu.memory_space<vmem>>, vector<1x8x16xf32>
    %125 = vector.shape_cast %124 : vector<1x8x16xf32> to vector<8x16xf32>
    %126 = vector.shape_cast %123 : vector<8x16xf32> to vector<1x8x16xf32>
    tpu.vector_store %arg3[%c0_119, %c0_120, %c208_121], %126 {strides = array<i32>} : memref<1x8x256xf32, #tpu.memory_space<vmem>>, vector<1x8x16xf32>,
    %127 = vector.extract_strided_slice %70 {offsets = [0, 252], sizes = [8, 16], strides = [1, 1]} : vector<8x286xf32> to vector<8x16xf32>
    %c0_122 = arith.constant 0 : index
    %c0_123 = arith.constant 0 : index
    %c224_124 = arith.constant 224 : index
    %128 = vector.load %arg3[%c0_122, %c0_123, %c224_124] : memref<1x8x256xf32, #tpu.memory_space<vmem>>, vector<1x8x16xf32>
    %129 = vector.shape_cast %128 : vector<1x8x16xf32> to vector<8x16xf32>
    %130 = vector.shape_cast %127 : vector<8x16xf32> to vector<1x8x16xf32>
    tpu.vector_store %arg3[%c0_122, %c0_123, %c224_124], %130 {strides = array<i32>} : memref<1x8x256xf32, #tpu.memory_space<vmem>>, vector<1x8x16xf32>,
    %131 = vector.extract_strided_slice %70 {offsets = [0, 270], sizes = [8, 16], strides = [1, 1]} : vector<8x286xf32> to vector<8x16xf32>
    %c0_125 = arith.constant 0 : index
    %c0_126 = arith.constant 0 : index
    %c240_127 = arith.constant 240 : index
    %132 = vector.load %arg3[%c0_125, %c0_126, %c240_127] : memref<1x8x256xf32, #tpu.memory_space<vmem>>, vector<1x8x16xf32>
    %133 = vector.shape_cast %132 : vector<1x8x16xf32> to vector<8x16xf32>
    %134 = vector.shape_cast %131 : vector<8x16xf32> to vector<1x8x16xf32>
    tpu.vector_store %arg3[%c0_125, %c0_126, %c240_127], %134 {strides = array<i32>} : memref<1x8x256xf32, #tpu.memory_space<vmem>>, vector<1x8x16xf32>,
    return
  }
  func.func @transform_0(%arg0: i32) -> (i32, i32, i32) {
    %c0_i32 = arith.constant 0 : i32
    %c0_i32_0 = arith.constant 0 : i32
    %c0_i32_1 = arith.constant 0 : i32
    return %arg0, %c0_i32, %c0_i32_0 : i32, i32, i32
  }
  func.func @transform_1(%arg0: i32) -> (i32, i32) {
    %c0_i32 = arith.constant 0 : i32
    %c0_i32_0 = arith.constant 0 : i32
    %c0_i32_1 = arith.constant 0 : i32
    return %c0_i32, %c0_i32_0 : i32, i32
  }
  func.func @transform_2(%arg0: i32) -> (i32, i32, i32) {
    %c0_i32 = arith.constant 0 : i32
    %c0_i32_0 = arith.constant 0 : i32
    %c0_i32_1 = arith.constant 0 : i32
    return %arg0, %c0_i32, %c0_i32_0 : i32, i32, i32
  }
}

</mosaic_0001>

<llo_original>
// kernel: tpu_custom_call.1
$region0: #{tpu_custom_call.1}
  #allocation0 [shape = 'u32[]', space=smem, size = 0x4, offset = 0x4, fixed_abs, tag = 'smem constant byte address 0x4 - core index']
  #allocation1 [shape = 'u32[144,128]{1,0:T(1,128)}', space=vmem, size = 0x12000, scoped, tag = 'internal scratch']
  #allocation2 [shape = 'f32[4,324]{1,0:T(4,128)}', space=vmem, size = 0x1800, scoped, tag = 'scratch operand']
  #allocation3 [shape = 'f32[36,286]{1,0:T(8,128)}', space=vmem, size = 0xf000, scoped, tag = 'scratch operand']
  %s0 = inlined_call_operand.hbm [shape: f32[2,4,256], index: 0, kind: input, shape index: {}]
  %s1 = inlined_call_operand.hbm [shape: f32[8,36], index: 1, kind: input, shape index: {}]
  %s2 = inlined_call_operand.hbm [shape: f32[2,8,256], index: 2, kind: output, shape index: {}]
  %s3 = sld [smem:[#allocation0]]
  $region49: #{tpu_custom_call.1} parent=0
    _
  %s5 = ssub.s32 1, %s3
  %s6 = scalar_select 0, %s5, %s3
  $region1: #{tpu_custom_call.1} parent=0
    #allocation4 [shape = 'u8[8192]{0}', space=vmem, size = 0x2000, scoped, tag = 'input window, operand 0']
    #allocation5 [shape = 's32[2]{0}', space=sflag, size = 0x8, scoped, tag = 'scoped memory for tpu_custom_call.1']
    #allocation6 [shape = 's32[2]{0}', space=sflag, size = 0x8, scoped, tag = 'scoped memory for tpu_custom_call.1']
    #allocation7 [shape = 'u8[4096]{0}', space=vmem, size = 0x1000, scoped, tag = 'input window, operand 1, single buffered']
    #allocation8 [shape = 's32[1]{0}', space=sflag, size = 0x4, scoped, tag = 'scoped memory for tpu_custom_call.1']
    #allocation9 [shape = 'u8[16384]{0}', space=vmem, size = 0x4000, scoped, tag = 'output window, operand 0']
    %7 = vsyncpa [#allocation5], 0
    %s8 = scalar_lea.sflag [#allocation5], 1
    %9 = vsyncpa %s8, 0
    %10 = vsyncpa [#allocation8], 0
    %11 = vsyncpa [#allocation6], 0
    %s12 = scalar_lea.sflag [#allocation6], 1
    %13 = vsyncpa %s12, 0
    loop: start=0, step=1, limit=4
    $region2: #{tpu_custom_call.1} parent=1 // loop_pre_header
      _
    $region3: #{tpu_custom_call.1} parent=1 // loop_header
      %s15 = sphi 0, %s19
      %p16 = scmp.ge.s32.totalorder %s15, 4
      %s25 = sphi 0, %s27
      %s28 = sphi 0, %s25
      %s29 = sphi 0, %s28
      %s45 = sphi 0, %s29
      %s49 = sphi 0, %s49
      %s51 = sphi 0, %s49
      %s52 = sphi 0, %s51
      %s66 = sphi 0, %s52
      %s72 = sphi 0, %s74
      %s75 = sphi 0, %s72
      %s76 = sphi 0, %s75
      %s92 = sphi 0, %s76
    $region4: #{tpu_custom_call.1} parent=1 // loop_header_branch
      %18 = sbr.rel (%p16) target = $region8
    $region5: #{tpu_custom_call.1} parent=1 // loop_body
      %s20 = ssub.s32 %s15, 1
      %s21 = ssub.s32 %s15, 2
      %s22 = sadd.s32 %s15, 1
      %s23 = ssub.s32 %s15, %s22
      %p24 = scmp.eq.s32.totalorder %s23, 0
      %s26 = sadd.s32 %s25, 1
      %s27 = scalar_select %p24, %s25, %s26
      %p30 = pneg %p24
      %p31 = scmp.eq.s32.totalorder %s15, 1
      %p32 = por %p30, %p31
      %p33 = scmp.ne.s32.totalorder %s25, %s28
      %p34 = scmp.eq.s32.totalorder %s15, 0
      %p35 = por %p33, %p34
      %p36 = scmp.ne.s32.totalorder %s25, %s28
      %p37 = scmp.eq.s32.totalorder %s20, 1
      %p38 = por %p36, %p37
      %p39 = scmp.ne.s32.totalorder %s28, %s29
      %p40 = scmp.eq.s32.totalorder %s20, 0
      %p41 = por %p39, %p40
      %p42 = scmp.ne.s32.totalorder %s28, %s29
      %p43 = scmp.eq.s32.totalorder %s21, 1
      %p44 = por %p42, %p43
      %p46 = scmp.ne.s32.totalorder %s29, %s45
      %p47 = scmp.eq.s32.totalorder %s21, 0
      %p48 = por %p46, %p47
      %s50 = sadd.s32 %s49, 1
      %p53 = scmp.eq.s32.totalorder %s15, 1
      %p54 = scmp.ne.s32.totalorder %s49, %s51
      %p55 = scmp.eq.s32.totalorder %s15, 0
      %p56 = por %p54, %p55
      %p57 = scmp.ne.s32.totalorder %s49, %s51
      %p58 = scmp.eq.s32.totalorder %s20, 1
      %p59 = por %p57, %p58
      %p60 = scmp.ne.s32.totalorder %s51, %s52
      %p61 = scmp.eq.s32.totalorder %s20, 0
      %p62 = por %p60, %p61
      %p63 = scmp.ne.s32.totalorder %s51, %s52
      %p64 = scmp.eq.s32.totalorder %s21, 1
      %p65 = por %p63, %p64
      %p67 = scmp.ne.s32.totalorder %s52, %s66
      %p68 = scmp.eq.s32.totalorder %s21, 0
      %p69 = por %p67, %p68
      %s70 = ssub.s32 %s15, %s22
      %p71 = scmp.eq.s32.totalorder %s70, 0
      %s73 = sadd.s32 %s72, 1
      %s74 = scalar_select %p71, %s72, %s73
      %p77 = pneg %p71
      %p78 = scmp.eq.s32.totalorder %s15, 1
      %p79 = por %p77, %p78
      %p80 = scmp.ne.s32.totalorder %s72, %s75
      %p81 = scmp.eq.s32.totalorder %s15, 0
      %p82 = por %p80, %p81
      %p83 = scmp.ne.s32.totalorder %s72, %s75
      %p84 = scmp.eq.s32.totalorder %s20, 1
      %p85 = por %p83, %p84
      %p86 = scmp.ne.s32.totalorder %s75, %s76
      %p87 = scmp.eq.s32.totalorder %s20, 0
      %p88 = por %p86, %p87
      %p89 = scmp.ne.s32.totalorder %s75, %s76
      %p90 = scmp.eq.s32.totalorder %s21, 1
      %p91 = por %p89, %p90
      %p93 = scmp.ne.s32.totalorder %s76, %s92
      %p94 = scmp.eq.s32.totalorder %s21, 0
      %p95 = por %p93, %p94
      %p96 = scmp.le.s32.totalorder 1, %s15
      %p97 = scmp.lt.s32.totalorder %s15, 3
      %p98 = pnand %p96, %p97
      %p99 = pneg %p98
      // Predicated region
      $region9: #{tpu_custom_call.1} parent=5 // pred_check
        _
      $region10: #{tpu_custom_call.1} parent=5 // pred_check_branch
        %101 = sbr.rel (%p98) target = $region12
      $region11: #{tpu_custom_call.1} parent=5 // pred_region
        %s102 = ssub.s32 %s15, 1
        // Predicated region
        $region13: #{tpu_custom_call.1} parent=11 // pred_check
          %p103 = pneg %p62
        $region14: #{tpu_custom_call.1} parent=11 // pred_check_branch
          %105 = sbr.rel (%p103) target = $region16
        $region15: #{tpu_custom_call.1} parent=11 // pred_region
          %s107 = ssub.s32 128, 128
          %108 = vsyncadd [#allocation8], %s107
          %s110 = sshll.u32 [#allocation7], 4
          %s111 = int_to_ptr.vmem [resolvable:$true] %s110
          %113 = dma.hbm_to_vmem [thread:$0]  %s1, 128, %s111, [#allocation8]
        $region16: #{tpu_custom_call.1} parent=11 // pred_fallthru
          _
      $region12: #{tpu_custom_call.1} parent=5 // pred_fallthru
        _
      %p114 = scmp.lt.s32.totalorder %s15, 2
      // Predicated region
      $region17: #{tpu_custom_call.1} parent=5 // pred_check
        %p115 = pneg %p114
      $region18: #{tpu_custom_call.1} parent=5 // pred_check_branch
        %117 = sbr.rel (%p115) target = $region20
      $region19: #{tpu_custom_call.1} parent=5 // pred_region
        // Predicated region
        $region21: #{tpu_custom_call.1} parent=19 // pred_check
          %p118 = pneg %p35
        $region22: #{tpu_custom_call.1} parent=19 // pred_check_branch
          %120 = sbr.rel (%p118) target = $region24
        $region23: #{tpu_custom_call.1} parent=19 // pred_region
          %s121 = sand.u32 %s25, 1
          %s122 = scalar_lea.sflag [#allocation5], %s121
          %s123 = sand.u32 %s25, 1
          %s124 = smul.addr %s123, 8
          %s125 = scalar_lea.vmem [#allocation4], %s124
          %s127 = ssub.s32 128, 128
          %128 = vsyncadd %s122, %s127
          %s129 = smul.addr %s15, 2
          %s130 = smul.addr %s129, 64
          %s131 = scalar_lea.hbm %s0, %s130
          %s133 = sshll.u32 %s125, 4
          %s134 = int_to_ptr.vmem [resolvable:$true] %s133
          %136 = dma.hbm_to_vmem [thread:$0]  %s131, 128, %s134, %s122
        $region24: #{tpu_custom_call.1} parent=19 // pred_fallthru
          _
      $region20: #{tpu_custom_call.1} parent=5 // pred_fallthru
        _
      %p137 = scmp.le.s32.totalorder 1, %s15
      %p138 = scmp.lt.s32.totalorder %s15, 3
      %p139 = pnand %p137, %p138
      %p140 = pneg %p139
      // Predicated region
      $region25: #{tpu_custom_call.1} parent=5 // pred_check
        _
      $region26: #{tpu_custom_call.1} parent=5 // pred_check_branch
        %142 = sbr.rel (%p139) target = $region28
      $region27: #{tpu_custom_call.1} parent=5 // pred_region
        %s143 = ssub.s32 %s15, 1
        %s144 = sand.u32 %s28, 1
        %s145 = scalar_lea.sflag [#allocation5], %s144
        %s146 = sand.u32 %s28, 1
        %s147 = smul.addr %s146, 8
        %s148 = scalar_lea.vmem [#allocation4], %s147
        // Predicated region
        $region29: #{tpu_custom_call.1} parent=27 // pred_check
          %p149 = pneg %p41
        $region30: #{tpu_custom_call.1} parent=27 // pred_check_branch
          %151 = sbr.rel (%p149) target = $region32
        $region31: #{tpu_custom_call.1} parent=27 // pred_region
          %152 = dma.done %s145, 128
        $region32: #{tpu_custom_call.1} parent=27 // pred_fallthru
          _
        // Predicated region
        $region33: #{tpu_custom_call.1} parent=27 // pred_check
          %p153 = pneg %p62
        $region34: #{tpu_custom_call.1} parent=27 // pred_check_branch
          %155 = sbr.rel (%p153) target = $region36
        $region35: #{tpu_custom_call.1} parent=27 // pred_region
          %156 = dma.done [#allocation8], 128
        $region36: #{tpu_custom_call.1} parent=27 // pred_fallthru
          _
        %s157 = sand.u32 %s28, 1
        %s158 = scalar_lea.sflag [#allocation5], %s157
        %s159 = sand.u32 %s28, 1
        %s160 = smul.addr %s159, 8
        %s161 = scalar_lea.vmem [#allocation4], %s160
        %p162 = pneg %p41
        %p163 = pneg %p38
        %p164 = pneg %p62
        %p165 = pneg %p59
        %p166 = pneg %p88
        %p167 = pneg %p85
        %s168 = sand.u32 %s75, 1
        %s169 = scalar_lea.sflag [#allocation6], %s168
        %s170 = sand.u32 %s75, 1
        %s171 = smul.addr %s170, 16
        %s172 = scalar_lea.vmem [#allocation9], %s171
        %173 = vst [vmem:[#allocation2] sm:$0xff] 0.0
        %vm174 = vcmask 551936
        %175 = vst.msk [vmem:[#allocation2 + $0x8] sm:$0xf] %vm174, 0.0
        %v176 = vld [vmem:[%s148] sm:$0xf]
        %178 = vrot.lane.b32.xlu0 %v176, 19
        %v179 = vpop.permute.xlu0 %178
        %vm181 = vcmask 281752
        %182 = vst.msk [vmem:[#allocation2] sm:$0xf] %vm181, %v179
        %v183 = vld [vmem:[%s148] sm:$0xf]
        %185 = vrot.lane.b32.xlu0 %v183, 21
        %v186 = vpop.permute.xlu0 %185
        %vm188 = vcmask 429352
        %189 = vst.msk [vmem:[#allocation2] sm:$0xf] %vm188, %v186
        %v190 = vld [vmem:[%s148] sm:$0xf]
        %192 = vrot.lane.b32.xlu0 %v190, 23
        %v193 = vpop.permute.xlu0 %192
        %vm195 = vcmask 576952
        %196 = vst.msk [vmem:[#allocation2] sm:$0xf] %vm195, %v193
        %v197 = vld [vmem:[%s148] sm:$0xf]
        %199 = vrot.lane.b32.xlu0 %v197, 25
        %v200 = vpop.permute.xlu0 %199
        %vm202 = vcmask 724552
        %203 = vst.msk [vmem:[#allocation2] sm:$0xf] %vm202, %v200
        %v204 = vld [vmem:[%s148] sm:$0xf]
        %206 = vrot.lane.b32.xlu0 %v204, 27
        %v207 = vpop.permute.xlu0 %206
        %vm209 = vcmask 872152
        %210 = vst.msk [vmem:[#allocation2] sm:$0xf] %vm209, %v207
        %v211 = vld [vmem:[%s148] sm:$0xf]
        %213 = vrot.lane.b32.xlu0 %v211, 29
        %v214 = vpop.permute.xlu0 %213
        %vm216 = vcmask 1019752
        %217 = vst.msk [vmem:[#allocation2] sm:$0xf] %vm216, %v214
        %v218 = vld [vmem:[%s148] sm:$0xf]
        %220 = vrot.lane.b32.xlu0 %v218, 31
        %v221 = vpop.permute.xlu0 %220
        %v222 = vrot.slane %v221, 4
        %vm223 = vcmask 252928
        %v224 = vsel %vm223, %v222, %v221
        %vm226 = vcmask 1044472
        %vm227 = vcmask 121860
        %vm228 = vmor %vm227, %vm226
        %229 = vst.msk [vmem:[#allocation2] sm:$0xff] %vm228, %v224
        %v230 = vld [vmem:[%s148] sm:$0xf]
        %232 = vrot.lane.b32.xlu0 %v230, 33
        %v233 = vpop.permute.xlu0 %232
        %vm235 = vcmask 265352
        %236 = vst.msk [vmem:[#allocation2 + $0x4] sm:$0xf] %vm235, %v233
        %v237 = vld [vmem:[%s148 + $0x4] sm:$0xf]
        %239 = vrot.lane.b32.xlu0 %v237, 35
        %v240 = vpop.permute.xlu0 %239
        %vm242 = vcmask 412952
        %243 = vst.msk [vmem:[#allocation2 + $0x4] sm:$0xf] %vm242, %v240
        %v244 = vld [vmem:[%s148 + $0x4] sm:$0xf]
        %246 = vrot.lane.b32.xlu0 %v244, 37
        %v247 = vpop.permute.xlu0 %246
        %vm249 = vcmask 560552
        %250 = vst.msk [vmem:[#allocation2 + $0x4] sm:$0xf] %vm249, %v247
        %v251 = vld [vmem:[%s148 + $0x4] sm:$0xf]
        %253 = vrot.lane.b32.xlu0 %v251, 39
        %v254 = vpop.permute.xlu0 %253
        %vm256 = vcmask 708152
        %257 = vst.msk [vmem:[#allocation2 + $0x4] sm:$0xf] %vm256, %v254
        %v258 = vld [vmem:[%s148 + $0x4] sm:$0xf]
        %260 = vrot.lane.b32.xlu0 %v258, 41
        %v261 = vpop.permute.xlu0 %260
        %vm263 = vcmask 855752
        %264 = vst.msk [vmem:[#allocation2 + $0x4] sm:$0xf] %vm263, %v261
        %v265 = vld [vmem:[%s148 + $0x4] sm:$0xf]
        %267 = vrot.lane.b32.xlu0 %v265, 43
        %v268 = vpop.permute.xlu0 %267
        %vm270 = vcmask 1003352
        %271 = vst.msk [vmem:[#allocation2 + $0x4] sm:$0xf] %vm270, %v268
        %v272 = vld [vmem:[%s148 + $0x4] sm:$0xf]
        %274 = vrot.lane.b32.xlu0 %v272, 45
        %v275 = vpop.permute.xlu0 %274
        %v276 = vrot.slane %v275, 4
        %vm277 = vcmask 367616
        %v278 = vsel %vm277, %v276, %v275
        %vm280 = vcmask 1044456
        %vm281 = vcmask 105476
        %vm282 = vmor %vm281, %vm280
        %283 = vst.msk [vmem:[#allocation2 + $0x4] sm:$0xff] %vm282, %v278
        %v284 = vld [vmem:[%s148 + $0x4] sm:$0xf]
        %286 = vrot.lane.b32.xlu0 %v284, 47
        %v287 = vpop.permute.xlu0 %286
        %vm289 = vcmask 248952
        %290 = vst.msk [vmem:[#allocation2 + $0x8] sm:$0xf] %vm289, %v287
        %v291 = vld [vmem:[%s148 + $0x4] sm:$0xf]
        %293 = vrot.lane.b32.xlu0 %v291, 49
        %v294 = vpop.permute.xlu0 %293
        %vm296 = vcmask 396552
        %297 = vst.msk [vmem:[#allocation2 + $0x8] sm:$0xf] %vm296, %v294
        %v298 = vld [vmem:[#allocation2] sm:$0xff]
        %v299 = vld [vmem:[#allocation2 + $0x8] sm:$0xf]
        %v301 = vcombine.high %v298, %v298
        %303 = vst [vmem:[#allocation3] sm:$0xf] %v298
        %304 = vst [vmem:[#allocation3 + $0x8] sm:$0xf] %v301
        %vm305 = vcmask 240640
        %306 = vst.msk [vmem:[#allocation3 + $0x10] sm:$0xf] %vm305, %v299
        %v307 = vld [vmem:[#allocation2] sm:$0xff]
        %v308 = vld [vmem:[#allocation2 + $0x8] sm:$0xf]
        %v311 = vcombine.low %v307, %v307
        %v312 = vcombine.low %v308, %v308
        %313 = vrot.lane.b32.xlu0 %v311, 127
        %v314 = vpop.permute.xlu0 %313
        %315 = vrot.lane.b32.xlu0 %v307, 127
        %v316 = vpop.permute.xlu0 %315
        %317 = vrot.lane.b32.xlu0 %v312, 127
        %v318 = vpop.permute.xlu0 %317
        %vm319 = vcmask 1039360
        %v320 = vsel %vm319, %v314, %v316
        %v321 = vsel %vm319, %v316, %v318
        %325 = vst [vmem:[#allocation3] sm:$0xf0] %v320
        %326 = vst [vmem:[#allocation3 + $0x8] sm:$0xf0] %v321
        %vm327 = vcmask 244740
        %328 = vst.msk [vmem:[#allocation3 + $0x10] sm:$0xf0] %vm327, %v318
        %v329 = vld [vmem:[#allocation2] sm:$0xff]
        %v330 = vld [vmem:[#allocation2 + $0x8] sm:$0xf]
        %v333 = vcombine.high %v329, %v329
        %334 = vrot.lane.b32.xlu0 %v329, 126
        %v335 = vpop.permute.xlu0 %334
        %336 = vrot.lane.b32.xlu0 %v333, 126
        %v337 = vpop.permute.xlu0 %336
        %338 = vrot.lane.b32.xlu0 %v330, 126
        %v339 = vpop.permute.xlu0 %338
        %vm340 = vcmask 1031168
        %v341 = vsel %vm340, %v335, %v337
        %v342 = vsel %vm340, %v337, %v339
        %346 = vst [vmem:[#allocation3 + $0x18] sm:$0xf] %v341
        %347 = vst [vmem:[#allocation3 + $0x20] sm:$0xf] %v342
        %348 = vst.msk [vmem:[#allocation3 + $0x28] sm:$0xf] %vm305, %v339
        %v349 = vld [vmem:[#allocation2] sm:$0xff]
        %v350 = vld [vmem:[#allocation2 + $0x8] sm:$0xf]
        %v353 = vcombine.low %v349, %v349
        %v354 = vcombine.low %v350, %v350
        %355 = vrot.lane.b32.xlu0 %v353, 110
        %v356 = vpop.permute.xlu0 %355
        %357 = vrot.lane.b32.xlu0 %v349, 110
        %v358 = vpop.permute.xlu0 %357
        %359 = vrot.lane.b32.xlu0 %v354, 110
        %v360 = vpop.permute.xlu0 %359
        %vm361 = vcmask 900096
        %v362 = vsel %vm361, %v356, %v358
        %v363 = vsel %vm361, %v358, %v360
        %367 = vst [vmem:[#allocation3 + $0x18] sm:$0xf0] %v362
        %368 = vst [vmem:[#allocation3 + $0x20] sm:$0xf0] %v363
        %369 = vst.msk [vmem:[#allocation3 + $0x28] sm:$0xf0] %vm327, %v360
        %v370 = vld [vmem:[#allocation2] sm:$0xff]
        %v371 = vld [vmem:[#allocation2 + $0x8] sm:$0xf]
        %v374 = vcombine.high %v370, %v370
        %375 = vrot.lane.b32.xlu0 %v370, 109
        %v376 = vpop.permute.xlu0 %375
        %377 = vrot.lane.b32.xlu0 %v374, 109
        %v378 = vpop.permute.xlu0 %377
        %379 = vrot.lane.b32.xlu0 %v371, 109
        %v380 = vpop.permute.xlu0 %379
        %vm381 = vcmask 891904
        %v382 = vsel %vm381, %v376, %v378
        %v383 = vsel %vm381, %v378, %v380
        %387 = vst [vmem:[#allocation3 + $0x30] sm:$0xf] %v382
        %388 = vst [vmem:[#allocation3 + $0x38] sm:$0xf] %v383
        %389 = vst.msk [vmem:[#allocation3 + $0x40] sm:$0xf] %vm305, %v380
        %v390 = vld [vmem:[#allocation2] sm:$0xff]
        %v391 = vld [vmem:[#allocation2 + $0x8] sm:$0xf]
        %v394 = vcombine.low %v390, %v390
        %v395 = vcombine.low %v391, %v391
        %396 = vrot.lane.b32.xlu0 %v394, 108
        %v397 = vpop.permute.xlu0 %396
        %398 = vrot.lane.b32.xlu0 %v390, 108
        %v399 = vpop.permute.xlu0 %398
        %400 = vrot.lane.b32.xlu0 %v395, 108
        %v401 = vpop.permute.xlu0 %400
        %vm402 = vcmask 883712
        %v403 = vsel %vm402, %v397, %v399
        %v404 = vsel %vm402, %v399, %v401
        %408 = vst [vmem:[#allocation3 + $0x30] sm:$0xf0] %v403
        %409 = vst [vmem:[#allocation3 + $0x38] sm:$0xf0] %v404
        %410 = vst.msk [vmem:[#allocation3 + $0x40] sm:$0xf0] %vm327, %v401
        %v411 = vld [vmem:[#allocation2] sm:$0xff]
        %v412 = vld [vmem:[#allocation2 + $0x8] sm:$0xf]
        %v415 = vcombine.high %v411, %v411
        %416 = vrot.lane.b32.xlu0 %v411, 92
        %v417 = vpop.permute.xlu0 %416
        %418 = vrot.lane.b32.xlu0 %v415, 92
        %v419 = vpop.permute.xlu0 %418
        %420 = vrot.lane.b32.xlu0 %v412, 92
        %v421 = vpop.permute.xlu0 %420
        %vm422 = vcmask 752640
        %v423 = vsel %vm422, %v417, %v419
        %v424 = vsel %vm422, %v419, %v421
        %428 = vst [vmem:[#allocation3 + $0x48] sm:$0xf] %v423
        %429 = vst [vmem:[#allocation3 + $0x50] sm:$0xf] %v424
        %430 = vst.msk [vmem:[#allocation3 + $0x58] sm:$0xf] %vm305, %v421
        %v431 = vld [vmem:[#allocation2] sm:$0xff]
        %v432 = vld [vmem:[#allocation2 + $0x8] sm:$0xf]
        %v435 = vcombine.low %v431, %v431
        %v436 = vcombine.low %v432, %v432
        %437 = vrot.lane.b32.xlu0 %v435, 91
        %v438 = vpop.permute.xlu0 %437
        %439 = vrot.lane.b32.xlu0 %v431, 91
        %v440 = vpop.permute.xlu0 %439
        %441 = vrot.lane.b32.xlu0 %v436, 91
        %v442 = vpop.permute.xlu0 %441
        %vm443 = vcmask 744448
        %v444 = vsel %vm443, %v438, %v440
        %v445 = vsel %vm443, %v440, %v442
        %449 = vst [vmem:[#allocation3 + $0x48] sm:$0xf0] %v444
        %450 = vst [vmem:[#allocation3 + $0x50] sm:$0xf0] %v445
        %451 = vst.msk [vmem:[#allocation3 + $0x58] sm:$0xf0] %vm327, %v442
        %v452 = vld [vmem:[#allocation2] sm:$0xff]
        %v453 = vld [vmem:[#allocation2 + $0x8] sm:$0xf]
        %v456 = vcombine.high %v452, %v452
        %457 = vrot.lane.b32.xlu0 %v452, 90
        %v458 = vpop.permute.xlu0 %457
        %459 = vrot.lane.b32.xlu0 %v456, 90
        %v460 = vpop.permute.xlu0 %459
        %461 = vrot.lane.b32.xlu0 %v453, 90
        %v462 = vpop.permute.xlu0 %461
        %vm463 = vcmask 736256
        %v464 = vsel %vm463, %v458, %v460
        %v465 = vsel %vm463, %v460, %v462
        %469 = vst [vmem:[#allocation3 + $0x60] sm:$0xf] %v464
        %470 = vst [vmem:[#allocation3 + $0x68] sm:$0xf] %v465
        %471 = vst.msk [vmem:[#allocation3 + $0x70] sm:$0xf] %vm305, %v462
        %v472 = vld [vmem:[#allocation7] sm:$0xff]
        %v473 = vld [vmem:[#allocation3] sm:$0xff]
        %v474 = vld [vmem:[#allocation3 + $0x8] sm:$0xff]
        %v475 = vld [vmem:[#allocation3 + $0x10] sm:$0xff]
        %v476 = vld [vmem:[#allocation3 + $0x18] sm:$0xff]
        %v477 = vld [vmem:[#allocation3 + $0x20] sm:$0xff]
        %v478 = vld [vmem:[#allocation3 + $0x28] sm:$0xff]
        %v479 = vld [vmem:[#allocation3 + $0x30] sm:$0xff]
        %v480 = vld [vmem:[#allocation3 + $0x38] sm:$0xff]
        %v481 = vld [vmem:[#allocation3 + $0x40] sm:$0xff]
        %v482 = vld [vmem:[#allocation3 + $0x48] sm:$0xff]
        %v483 = vld [vmem:[#allocation3 + $0x50] sm:$0xff]
        %v484 = vld [vmem:[#allocation3 + $0x58] sm:$0xff]
        %v485 = vld [vmem:[#allocation3 + $0x60] sm:$0xf]
        %v486 = vld [vmem:[#allocation3 + $0x68] sm:$0xf]
        %v487 = vld [vmem:[#allocation3 + $0x70] sm:$0xf]
        %vm488 = vcmask 293888
        %v490 = vsel %vm488, %v472, 0
        %vm492 = vcmask 1043456
        %v494 = vsel %vm492, %v485, 0
        %v497 = vsel %vm492, %v486, 0
        %v500 = vsel %vm492, %v487, 0
        %502 = vmatprep.subr.mxu0 %v474
        %503 = vmatpush1.msra.mxu0 %v473
        %504 = vmatprep.subr.mxu0 %v477
        %505 = vmatpush1.msra.mxu0 %v476
        %506 = vmatprep.subr.mxu0 %v480
        %507 = vmatpush1.msra.mxu0 %v479
        %508 = vmatprep.subr.mxu0 %v483
        %509 = vmatpush1.msra.mxu0 %v482
        %510 = vmatprep.subr.mxu0 %v497
        %511 = vmatpush1.msra.mxu0 %v494
        %512 = vmatprep.subr.mxu0 0.0
        %513 = vmatpush1.msra.mxu0 0.0
        %514 = vmatprep.subr.mxu0 0.0
        %515 = vmatpush1.msra.mxu0 0.0
        %516 = vmatprep.subr.mxu0 0.0
        %517 = vmatpush1.msra.mxu0 0.0
        %518 = vmatprep.subr.mxu0 0.0
        %519 = vmatpush1.msra.mxu0 0.0
        %520 = vmatprep.subr.mxu0 0.0
        %521 = vmatpush1.msra.mxu0 0.0
        %522 = vmatprep.subr.mxu0 0.0
        %523 = vmatpush1.msra.mxu0 0.0
        %524 = vmatprep.subr.mxu0 0.0
        %525 = vmatpush1.msra.mxu0 0.0
        %526 = vmatprep.subr.mxu0 0.0
        %527 = vmatpush1.msra.mxu0 0.0
        %528 = vmatprep.subr.mxu0 0.0
        %529 = vmatpush1.msra.mxu0 0.0
        %530 = vmatprep.subr.mxu0 0.0
        %531 = vmatpush1.msra.mxu0 0.0
        %532 = vmatprep.subr.mxu0 0.0
        %533 = vmatpush1.msra.mxu0 0.0
        %534 = vmatprep.subr.mxu0 0.0
        %535 = vmatpush1.msra.mxu0 0.0
        %536 = vmatprep.subr.mxu0 0.0
        %537 = vmatpush1.msra.mxu0 0.0
        %538 = vmatprep.subr.mxu0 0.0
        %539 = vmatpush1.msra.mxu0 0.0
        %540 = vmatprep.subr.mxu0 0.0
        %541 = vmatpush1.msra.mxu0 0.0
        %542 = vmatprep.subr.mxu0 0.0
        %543 = vmatpush1.msra.mxu0 0.0
        %544 = vmatprep.subr.mxu0 0.0
        %545 = vmatpush1.msra.mxu0 0.0
        %546 = vmatprep.subr.mxu0 0.0
        %547 = vmatpush1.msra.mxu0 0.0
        %548 = vmatprep.subr.mxu0 0.0
        %549 = vmatpush1.msra.mxu0 0.0
        %550 = vmatprep.subr.mxu0 0.0
        %551 = vmatpush1.msra.mxu0 0.0
        %552 = vmatprep.subr.mxu0 0.0
        %553 = vmatpush1.msra.mxu0 0.0
        %554 = vmatprep.subr.mxu0 0.0
        %555 = vmatpush1.msra.mxu0 0.0
        %556 = vmatprep.subr.mxu0 0.0
        %557 = vmatpush1.msra.mxu0 0.0
        %558 = vmatprep.subr.mxu0 0.0
        %559 = vmatpush1.msra.mxu0 0.0
        %560 = vmatprep.subr.mxu0 0.0
        %561 = vmatpush1.msra.mxu0 0.0
        %562 = vmatprep.subr.mxu0 0.0
        %563 = vmatpush1.msra.mxu0 0.0
        %564 = vmatprep.subr.mxu0 0.0
        %565 = vmatpush1.msra.mxu0 0.0
        %566 = vmatprep.mubr.f32.mxu0 0.0
        %567 = vmatmul.mubr.f32.gmra.mrb[0].mxu0 %v490
        %v568 = vpop.f32.mrb[0].mxu0
        %v569 = vadd.f32 0.0, %v568
        %v570 = vpop.f32.mrb[0].mxu0
        %v571 = vadd.f32 0.0, %v570
        %572 = vdwg.mxu0
        %573 = vmatprep.subr.mxu0 0.0
        %574 = vmatpush1.msra.mxu0 %v475
        %575 = vmatprep.subr.mxu0 0.0
        %576 = vmatpush1.msra.mxu0 %v478
        %577 = vmatprep.subr.mxu0 0.0
        %578 = vmatpush1.msra.mxu0 %v481
        %579 = vmatprep.subr.mxu0 0.0
        %580 = vmatpush1.msra.mxu0 %v484
        %581 = vmatprep.subr.mxu0 0.0
        %582 = vmatpush1.msra.mxu0 %v500
        %583 = vmatprep.subr.mxu0 0.0
        %584 = vmatpush1.msra.mxu0 0.0
        %585 = vmatprep.subr.mxu0 0.0
        %586 = vmatpush1.msra.mxu0 0.0
        %587 = vmatprep.subr.mxu0 0.0
        %588 = vmatpush1.msra.mxu0 0.0
        %589 = vmatprep.subr.mxu0 0.0
        %590 = vmatpush1.msra.mxu0 0.0
        %591 = vmatprep.subr.mxu0 0.0
        %592 = vmatpush1.msra.mxu0 0.0
        %593 = vmatprep.subr.mxu0 0.0
        %594 = vmatpush1.msra.mxu0 0.0
        %595 = vmatprep.subr.mxu0 0.0
        %596 = vmatpush1.msra.mxu0 0.0
        %597 = vmatprep.subr.mxu0 0.0
        %598 = vmatpush1.msra.mxu0 0.0
        %599 = vmatprep.subr.mxu0 0.0
        %600 = vmatpush1.msra.mxu0 0.0
        %601 = vmatprep.subr.mxu0 0.0
        %602 = vmatpush1.msra.mxu0 0.0
        %603 = vmatprep.subr.mxu0 0.0
        %604 = vmatpush1.msra.mxu0 0.0
        %605 = vmatprep.subr.mxu0 0.0
        %606 = vmatpush1.msra.mxu0 0.0
        %607 = vmatprep.subr.mxu0 0.0
        %608 = vmatpush1.msra.mxu0 0.0
        %609 = vmatprep.subr.mxu0 0.0
        %610 = vmatpush1.msra.mxu0 0.0
        %611 = vmatprep.subr.mxu0 0.0
        %612 = vmatpush1.msra.mxu0 0.0
        %613 = vmatprep.subr.mxu0 0.0
        %614 = vmatpush1.msra.mxu0 0.0
        %615 = vmatprep.subr.mxu0 0.0
        %616 = vmatpush1.msra.mxu0 0.0
        %617 = vmatprep.subr.mxu0 0.0
        %618 = vmatpush1.msra.mxu0 0.0
        %619 = vmatprep.subr.mxu0 0.0
        %620 = vmatpush1.msra.mxu0 0.0
        %621 = vmatprep.subr.mxu0 0.0
        %622 = vmatpush1.msra.mxu0 0.0
        %623 = vmatprep.subr.mxu0 0.0
        %624 = vmatpush1.msra.mxu0 0.0
        %625 = vmatprep.subr.mxu0 0.0
        %626 = vmatpush1.msra.mxu0 0.0
        %627 = vmatprep.subr.mxu0 0.0
        %628 = vmatpush1.msra.mxu0 0.0
        %629 = vmatprep.subr.mxu0 0.0
        %630 = vmatpush1.msra.mxu0 0.0
        %631 = vmatprep.subr.mxu0 0.0
        %632 = vmatpush1.msra.mxu0 0.0
        %633 = vmatprep.subr.mxu0 0.0
        %634 = vmatpush1.msra.mxu0 0.0
        %635 = vmatprep.subr.mxu0 0.0
        %636 = vmatpush1.msra.mxu0 0.0
        %637 = vmatprep.mubr.f32.mxu0 0.0
        %638 = vmatmul.mubr.f32.gmra.mrb[0].mxu0 %v490
        %v639 = vpop.f32.mrb[0].mxu0
        %v640 = vadd.f32 0.0, %v639
        %v641 = vpop.f32.mrb[0].mxu0
        %642 = vdwg.mxu0
        %vm643 = vcmask 130048
        %644 = vst.msk [vmem:[%s172] sm:$0xff] %vm643, %v569
        %646 = vrot.lane.b32.xlu0 %v569, 126
        %v647 = vpop.permute.xlu0 %646
        %vm649 = vcmask 261248
        %650 = vst.msk [vmem:[%s172] sm:$0xff] %vm649, %v647
        %651 = vrot.lane.b32.xlu0 %v569, 124
        %v652 = vpop.permute.xlu0 %651
        %vm654 = vcmask 392448
        %655 = vst.msk [vmem:[%s172] sm:$0xff] %vm654, %v652
        %656 = vrot.lane.b32.xlu0 %v569, 122
        %v657 = vpop.permute.xlu0 %656
        %vm659 = vcmask 523648
        %660 = vst.msk [vmem:[%s172] sm:$0xff] %vm659, %v657
        %661 = vrot.lane.b32.xlu0 %v569, 120
        %v662 = vpop.permute.xlu0 %661
        %vm664 = vcmask 654848
        %665 = vst.msk [vmem:[%s172] sm:$0xff] %vm664, %v662
        %666 = vrot.lane.b32.xlu0 %v569, 118
        %v667 = vpop.permute.xlu0 %666
        %vm669 = vcmask 786048
        %670 = vst.msk [vmem:[%s172] sm:$0xff] %vm669, %v667
        %671 = vrot.lane.b32.xlu0 %v569, 116
        %v672 = vpop.permute.xlu0 %671
        %vm674 = vcmask 917248
        %675 = vst.msk [vmem:[%s172] sm:$0xff] %vm674, %v672
        %677 = vrot.lane.b32.xlu0 %v569, 114
        %v678 = vpop.permute.xlu0 %677
        %679 = vrot.lane.b32.xlu0 %v571, 114
        %v680 = vpop.permute.xlu0 %679
        %vm681 = vcmask 932864
        %v682 = vsel %vm681, %v678, %v680
        %vm684 = vcmask 1048448
        %685 = vst.msk [vmem:[%s172] sm:$0xff] %vm684, %v682
        %686 = vrot.lane.b32.xlu0 %v571, 112
        %v687 = vpop.permute.xlu0 %686
        %689 = vst.msk [vmem:[%s172 + $0x8] sm:$0xff] %vm643, %v687
        %690 = vrot.lane.b32.xlu0 %v571, 110
        %v691 = vpop.permute.xlu0 %690
        %693 = vst.msk [vmem:[%s172 + $0x8] sm:$0xff] %vm649, %v691
        %694 = vrot.lane.b32.xlu0 %v571, 108
        %v695 = vpop.permute.xlu0 %694
        %697 = vst.msk [vmem:[%s172 + $0x8] sm:$0xff] %vm654, %v695
        %698 = vrot.lane.b32.xlu0 %v571, 106
        %v699 = vpop.permute.xlu0 %698
        %701 = vst.msk [vmem:[%s172 + $0x8] sm:$0xff] %vm659, %v699
        %702 = vrot.lane.b32.xlu0 %v571, 104
        %v703 = vpop.permute.xlu0 %702
        %705 = vst.msk [vmem:[%s172 + $0x8] sm:$0xff] %vm664, %v703
        %706 = vrot.lane.b32.xlu0 %v571, 102
        %v707 = vpop.permute.xlu0 %706
        %709 = vst.msk [vmem:[%s172 + $0x8] sm:$0xff] %vm669, %v707
        %711 = vrot.lane.b32.xlu0 %v571, 100
        %v712 = vpop.permute.xlu0 %711
        %713 = vrot.lane.b32.xlu0 %v640, 100
        %v714 = vpop.permute.xlu0 %713
        %vm715 = vcmask 818176
        %v716 = vsel %vm715, %v712, %v714
        %718 = vst.msk [vmem:[%s172 + $0x8] sm:$0xff] %vm674, %v716
        %719 = vrot.lane.b32.xlu0 %v640, 98
        %v720 = vpop.permute.xlu0 %719
        %722 = vst.msk [vmem:[%s172 + $0x8] sm:$0xff] %vm684, %v720
        %s723 = sand.u32 %s75, 1
        %s724 = scalar_lea.sflag [#allocation6], %s723
        %s725 = sand.u32 %s75, 1
        %s726 = smul.addr %s725, 16
        %s727 = scalar_lea.vmem [#allocation9], %s726
        // Predicated region
        $region37: #{tpu_custom_call.1} parent=27 // pred_check
          %p728 = pneg %p85
        $region38: #{tpu_custom_call.1} parent=27 // pred_check_branch
          %730 = sbr.rel (%p728) target = $region40
        $region39: #{tpu_custom_call.1} parent=27 // pred_region
          %s732 = ssub.s32 256, 256
          %733 = vsyncadd %s724, %s732
          %s734 = smul.addr %s20, 2
          %s735 = smul.addr %s734, 128
          %s736 = scalar_lea.hbm %s2, %s735
          %s738 = sshll.u32 %s727, 4
          %s739 = int_to_ptr.vmem [resolvable:$true] %s738
          %741 = dma.vmem_to_hbm [thread:$0]  %s739, 256, %s736, %s724
        $region40: #{tpu_custom_call.1} parent=27 // pred_fallthru
          _
      $region28: #{tpu_custom_call.1} parent=5 // pred_fallthru
        _
      %p742 = scmp.le.s32.totalorder 2, %s15
      // Predicated region
      $region41: #{tpu_custom_call.1} parent=5 // pred_check
        %p743 = pneg %p742
      $region42: #{tpu_custom_call.1} parent=5 // pred_check_branch
        %745 = sbr.rel (%p743) target = $region44
      $region43: #{tpu_custom_call.1} parent=5 // pred_region
        %s746 = ssub.s32 %s15, 2
        // Predicated region
        $region45: #{tpu_custom_call.1} parent=43 // pred_check
          %p747 = pneg %p91
        $region46: #{tpu_custom_call.1} parent=43 // pred_check_branch
          %749 = sbr.rel (%p747) target = $region48
        $region47: #{tpu_custom_call.1} parent=43 // pred_region
          %s750 = sand.u32 %s76, 1
          %s751 = scalar_lea.sflag [#allocation6], %s750
          %s752 = sand.u32 %s76, 1
          %s753 = smul.addr %s752, 16
          %s754 = scalar_lea.vmem [#allocation9], %s753
          %755 = dma.done %s751, 256
        $region48: #{tpu_custom_call.1} parent=43 // pred_fallthru
          _
      $region44: #{tpu_custom_call.1} parent=5 // pred_fallthru
        _
    $region6: #{tpu_custom_call.1} parent=1 // loop_footer
      %s19 = sadd.s32 1, %s15
    $region7: #{tpu_custom_call.1} parent=1 // loop_footer_branch
      %14 = sbr.rel target = $region3
    $region8: #{tpu_custom_call.1} parent=1 // loop_exit
      _
    %756 = vsyncpa [#allocation5], 1
    %s757 = scalar_lea.sflag [#allocation5], 1
    %758 = vsyncpa %s757, 1
    %759 = vsyncpa [#allocation8], 1
    %760 = vsyncpa [#allocation6], 1
    %s761 = scalar_lea.sflag [#allocation6], 1
    %762 = vsyncpa %s761, 1

</llo_original>
